<compile_context>
chip_gen: v7x
topology: tpu7x:2x2x1
jax: 0.10.0
libtpu: 0.0.40
codegen_flags: <defaults>
</compile_context>

<pallas_src>
import functools

import jax
import jax.numpy as jnp
from jax.experimental import pallas as pl
from jax.experimental.pallas import tpu as pltpu


_LANE = 128  # pad feature-like dims to a full vreg lane width


def _round_up(n, m):
    return ((n + m - 1) // m) * m


def _mlp_bn_kernel(x_ref, w1_ref, b1_ref, wh_ref, bn_ref, wo_ref, bo_ref,
                   o_ref, h_ref):
    """One grid step == one hidden layer.

    fc1 runs at step 0, the output projection at the last step; the activation
    is carried across grid steps in the VMEM scratch `h_ref` (f32).
    """
    i = pl.program_id(0)
    n_layers = pl.num_programs(0)

    # fc1 + ReLU (only on the first grid step).
    @pl.when(i == 0)
    def _fc1():
        h = jnp.dot(x_ref[...].astype(w1_ref.dtype), w1_ref[...],
                    preferred_element_type=jnp.float32) + b1_ref[...]
        h_ref[...] = jnp.maximum(h, 0.0)

    gamma = bn_ref[0:1, :]
    beta = bn_ref[1:2, :]
    eps = jnp.float32(1e-5)

    # Hidden linear layer i.  The per-layer bias was dropped at pack time: with
    # training-mode BatchNorm it is exactly cancelled by the mean subtraction.
    y = jnp.dot(h_ref[...].astype(wh_ref.dtype), wh_ref[0],
                preferred_element_type=jnp.float32)

    # BatchNorm1d training-mode stats over the batch axis (biased variance),
    # two-pass form (robust with bf16 matmul inputs), all in f32.
    mean = jnp.mean(y, axis=0, keepdims=True)
    var = jnp.mean((y - mean) ** 2, axis=0, keepdims=True)
    scale = gamma * jax.lax.rsqrt(var + eps)       # rsqrt -> EUP slot
    shift = beta - mean * scale
    h_ref[...] = jnp.maximum(y * scale + shift, 0.0)

    # Output projection (no activation) on the last grid step; lane-dense store.
    @pl.when(i == n_layers - 1)
    def _out_proj():
        o_ref[...] = jnp.dot(h_ref[...].astype(wo_ref.dtype), wo_ref[...],
                             preferred_element_type=jnp.float32) + bo_ref[...]


def pack_params(params, n_hidden_layers, weight_dtype=jnp.bfloat16):
    """One-time packing (off the hot path): transpose to [in,out], zero-pad all
    feature dims (incl. in_features) to 128 lanes, stack the per-layer hidden
    weights into one [L,Hp,Hp] array, stack gamma/beta, cast weights to bf16."""
    hidden_size = params["w1"].shape[0]
    in_features = params["w1"].shape[1]
    nb_classes = params["w_out"].shape[0]
    Hp = _round_up(hidden_size, _LANE)
    Cp = _round_up(nb_classes, _LANE)
    INp = _round_up(in_features, _LANE)

    def pad2(a, rows, cols):
        return jnp.pad(a, ((0, rows - a.shape[0]), (0, cols - a.shape[1])))

    w1 = pad2(params["w1"].T, INp, Hp).astype(weight_dtype)           # [INp, Hp]
    b1 = pad2(params["b1"].reshape(1, -1), 1, Hp)                     # [1, Hp] f32
    w_h = jnp.stack([pad2(params["w_h"][i].T, Hp, Hp)
                     for i in range(n_hidden_layers)]).astype(weight_dtype)  # [L,Hp,Hp]
    gamma = jnp.pad(params["gamma"], (0, Hp - hidden_size),
                    constant_values=1.0)
    beta = jnp.pad(params["beta"], (0, Hp - hidden_size))
    bn = jnp.stack([gamma, beta])                                     # [2, Hp] f32
    w_out = pad2(params["w_out"].T, Hp, Cp).astype(weight_dtype)      # [Hp, Cp]
    b_out = pad2(params["b_out"].reshape(1, -1), 1, Cp)               # [1, Cp] f32
    return {"w1": w1, "b1": b1, "w_h": w_h, "bn": bn,
            "w_out": w_out, "b_out": b_out}


@functools.partial(jax.jit, static_argnames=("n_hidden_layers", "nb_classes"))
def mlp_bn_forward(x, packed, *, n_hidden_layers, nb_classes):
    """x: [B, in_features]; packed: output of pack_params. Returns [B, nb_classes]."""
    B = x.shape[0]
    INp = packed["w1"].shape[0]
    Hp = packed["w_h"].shape[-1]
    Cp = packed["w_out"].shape[1]
    L = n_hidden_layers

    # Lane-align the fc1 contraction dim; zero feature columns hit zero weight
    # rows, so the result is unchanged.
    if x.shape[1] != INp:
        x = jnp.pad(x, ((0, 0), (0, INp - x.shape[1])))
    x = x.astype(jnp.float32)

    def nbytes(a):
        return a.size * a.dtype.itemsize

    flops = 2 * B * (INp * Hp + L * Hp * Hp + Hp * Cp) + 10 * L * B * Hp
    bytes_accessed = (nbytes(x) + nbytes(packed["w1"]) + nbytes(packed["b1"])
                      + nbytes(packed["w_h"]) + nbytes(packed["bn"])
                      + nbytes(packed["w_out"]) + nbytes(packed["b_out"])
                      + B * Cp * 4)
    cost = pl.CostEstimate(flops=flops, transcendentals=L * Hp,
                           bytes_accessed=bytes_accessed)

    out = pl.pallas_call(
        _mlp_bn_kernel,
        out_shape=jax.ShapeDtypeStruct((B, Cp), jnp.float32),
        grid_spec=pltpu.PrefetchScalarGridSpec(
            num_scalar_prefetch=0,
            grid=(L,),
            in_specs=[
                pl.BlockSpec((B, INp), lambda i: (0, 0)),       # x      (step 0 only)
                pl.BlockSpec((INp, Hp), lambda i: (0, 0)),      # w1
                pl.BlockSpec((1, Hp), lambda i: (0, 0)),        # b1
                pl.BlockSpec((1, Hp, Hp), lambda i: (i, 0, 0)),  # w_h, streamed per layer
                pl.BlockSpec((2, Hp), lambda i: (0, 0)),        # gamma/beta
                pl.BlockSpec((Hp, Cp), lambda i: (0, 0)),       # w_out
                pl.BlockSpec((1, Cp), lambda i: (0, 0)),        # b_out
            ],
            out_specs=pl.BlockSpec((B, Cp), lambda i: (0, 0)),
            scratch_shapes=[pltpu.VMEM((B, Hp), jnp.float32)],  # carried activation
        ),
        compiler_params=pltpu.CompilerParams(
            dimension_semantics=("arbitrary",)),                 # layers are serial
        cost_estimate=cost,
    )(x, packed["w1"], packed["b1"], packed["w_h"], packed["bn"],
      packed["w_out"], packed["b_out"])

    # TODO(synk): return the lane-dense [B, Cp] slab directly when the consumer
    # can take padded logits; this slice is a separate (tiny) XLA copy.
    return out[:, :nb_classes]


def init_params(key, in_features, nb_classes, n_hidden_layers, hidden_size):
    """Deterministic init mimicking torch.nn.Linear (U[-1/sqrt(fan_in), +]); torch layout."""
    def linear(k, fan_in, fan_out):
        kw, kb = jax.random.split(k)
        bound = 1.0 / jnp.sqrt(jnp.float32(fan_in))
        w = jax.random.uniform(kw, (fan_out, fan_in), jnp.float32, -bound, bound)
        b = jax.random.uniform(kb, (fan_out,), jnp.float32, -bound, bound)
        return w, b

    keys = jax.random.split(key, n_hidden_layers + 2)
    w1, b1 = linear(keys[0], in_features, hidden_size)
    w_h, b_h = [], []
    for i in range(n_hidden_layers):
        w, b = linear(keys[1 + i], hidden_size, hidden_size)
        w_h.append(w)
        b_h.append(b)
    w_out, b_out = linear(keys[-1], hidden_size, nb_classes)
    return {
        "w1": w1, "b1": b1,
        "w_h": w_h, "b_h": b_h,
        "gamma": jnp.ones((hidden_size,), jnp.float32),
        "beta": jnp.zeros((hidden_size,), jnp.float32),
        "w_out": w_out, "b_out": b_out,
    }


def reference_forward(x, params, n_hidden_layers, matmul_dtype=jnp.float32):
    """Pure-JAX reference with torch semantics (hidden bias included).
    matmul_dtype lets us also build a bf16-matmul reference matching the kernel."""
    def mm(a, b):
        return jnp.dot(a.astype(matmul_dtype), b.astype(matmul_dtype),
                       preferred_element_type=jnp.float32)

    h = jnp.maximum(mm(x, params["w1"].T) + params["b1"], 0.0)
    for i in range(n_hidden_layers):
        y = mm(h, params["w_h"][i].T) + params["b_h"][i]
        mean = jnp.mean(y, axis=0, keepdims=True)
        var = jnp.mean((y - mean) ** 2, axis=0, keepdims=True)
        y = (y - mean) * jax.lax.rsqrt(var + 1e-5) * params["gamma"] + params["beta"]
        h = jnp.maximum(y, 0.0)
    return mm(h, params["w_out"].T) + params["b_out"]


if __name__ == "__main__":
    # Small shapes consistent with the module's forward (x: [batch, in_features]).
    B, IN_FEATURES, HIDDEN, CLASSES, N_HIDDEN = 8, 32, 32, 8, 2

    key = jax.random.PRNGKey(0)
    kx, kp = jax.random.split(key)
    x = jax.random.normal(kx, (B, IN_FEATURES), jnp.float32)
    params = init_params(kp, IN_FEATURES, CLASSES, N_HIDDEN, HIDDEN)

    packed = pack_params(params, N_HIDDEN)            # one-time, off the hot path
    packed = jax.tree_util.tree_map(jax.block_until_ready, packed)

    out = mlp_bn_forward(x, packed, n_hidden_layers=N_HIDDEN, nb_classes=CLASSES)
    out = jax.block_until_ready(out)
    assert out.shape == (B, CLASSES)

    # 1) Kernel-math check vs. a reference using the same bf16-input / f32-accumulate
    #    matmuls (tight).
    ref_bf16 = reference_forward(x, params, N_HIDDEN, matmul_dtype=jnp.bfloat16)
    assert jnp.allclose(out, ref_bf16, atol=1e-2, rtol=1e-2), "mismatch vs bf16 reference"

    # 2) Torch-semantics check vs. the pure-f32 reference (loose tolerance reflects
    #    the bf16 MXU inputs requested by the perf review).
    ref_f32 = reference_forward(x, params, N_HIDDEN, matmul_dtype=jnp.float32)
    assert jnp.allclose(out, ref_f32, atol=1e-1, rtol=1e-1), "mismatch vs f32 reference"

    print("KERNEL_OK")
</pallas_src>

<mosaic_0001>
module attributes {stable_mosaic.version = 11 : i64} {
  func.func @_mlp_bn_kernel(%arg0: i32, %arg1: memref<8x128xf32, #tpu.memory_space<vmem>>, %arg2: memref<128x128xbf16, #tpu.memory_space<vmem>>, %arg3: memref<1x128xf32, #tpu.memory_space<vmem>>, %arg4: memref<1x128x128xbf16, #tpu.memory_space<vmem>>, %arg5: memref<2x128xf32, #tpu.memory_space<vmem>>, %arg6: memref<128x128xbf16, #tpu.memory_space<vmem>>, %arg7: memref<1x128xf32, #tpu.memory_space<vmem>>, %arg8: memref<8x128xf32, #tpu.memory_space<vmem>>, %arg9: memref<8x128xf32, #tpu.memory_space<vmem>>) attributes {dimension_semantics = [#tpu.dimension_semantics<arbitrary>], iteration_bounds = array<i64: 2>, scalar_prefetch = 0 : i64, scratch_operands = 1 : i64, tpu.core_type = #tpu.core_type<tc>, window_params = [{pipeline_mode = #tpu.pipeline_mode<synchronous>, transform_indices = @transform_0, window_bounds = array<i64: 8, 128>}, {pipeline_mode = #tpu.pipeline_mode<synchronous>, transform_indices = @transform_1, window_bounds = array<i64: 128, 128>}, {pipeline_mode = #tpu.pipeline_mode<synchronous>, transform_indices = @transform_2, window_bounds = array<i64: 1, 128>}, {transform_indices = @transform_3, window_bounds = array<i64: 1, 128, 128>}, {pipeline_mode = #tpu.pipeline_mode<synchronous>, transform_indices = @transform_4, window_bounds = array<i64: 2, 128>}, {pipeline_mode = #tpu.pipeline_mode<synchronous>, transform_indices = @transform_5, window_bounds = array<i64: 128, 128>}, {pipeline_mode = #tpu.pipeline_mode<synchronous>, transform_indices = @transform_6, window_bounds = array<i64: 1, 128>}, {pipeline_mode = #tpu.pipeline_mode<synchronous>, transform_indices = @transform_7, window_bounds = array<i64: 8, 128>}]} {
    %c0_i32 = arith.constant 0 : i32
    %0 = arith.cmpi eq, %arg0, %c0_i32 : i32
    %1 = arith.extui %0 : i1 to i32
    %c0_i32_0 = arith.constant 0 : i32
    %2 = arith.cmpi ne, %1, %c0_i32_0 : i32
    scf.if %2 {
      %c0_17 = arith.constant 0 : index
      %c0_18 = arith.constant 0 : index
      %37 = vector.load %arg1[%c0_17, %c0_18] : memref<8x128xf32, #tpu.memory_space<vmem>>, vector<8x128xf32>
      %38 = arith.truncf %37 : vector<8x128xf32> to vector<8x128xbf16>
      %c0_19 = arith.constant 0 : index
      %c0_20 = arith.constant 0 : index
      %39 = vector.load %arg2[%c0_19, %c0_20] : memref<128x128xbf16, #tpu.memory_space<vmem>>, vector<128x128xbf16>
      %cst_21 = arith.constant dense<0.000000e+00> : vector<8x128xf32>
      %40 = tpu.matmul %38, %39, %cst_21 {dimension_numbers = #tpu.dot_dimension_numbers<[1], [0], [0], [1], [0, 0, 1, 1], [], []>} : vector<8x128xbf16>, vector<128x128xbf16>, vector<8x128xf32> -> vector<8x128xf32>
      %c0_22 = arith.constant 0 : index
      %c0_23 = arith.constant 0 : index
      %41 = vector.load %arg3[%c0_22, %c0_23] : memref<1x128xf32, #tpu.memory_space<vmem>>, vector<1x128xf32>
      %42 = vector.broadcast %41 : vector<1x128xf32> to vector<8x128xf32>
      %43 = arith.addf %40, %42 : vector<8x128xf32>
      %cst_24 = arith.constant 0.000000e+00 : f32
      %44 = vector.broadcast %cst_24 : f32 to vector<8x128xf32>
      %45 = arith.maximumf %43, %44 : vector<8x128xf32>
      %c0_25 = arith.constant 0 : index
      %c0_26 = arith.constant 0 : index
      %46 = vector.load %arg9[%c0_25, %c0_26] : memref<8x128xf32, #tpu.memory_space<vmem>>, vector<8x128xf32>
      tpu.vector_store %arg9[%c0_25, %c0_26], %45 {strides = array<i32>} : memref<8x128xf32, #tpu.memory_space<vmem>>, vector<8x128xf32>,
    } else {
    }
    %c0 = arith.constant 0 : index
    %c0_1 = arith.constant 0 : index
    %3 = vector.load %arg5[%c0, %c0_1] : memref<2x128xf32, #tpu.memory_space<vmem>>, vector<1x128xf32>
    %c1 = arith.constant 1 : index
    %c0_2 = arith.constant 0 : index
    %4 = vector.load %arg5[%c1, %c0_2] : memref<2x128xf32, #tpu.memory_space<vmem>>, vector<1x128xf32>
    %c0_3 = arith.constant 0 : index
    %c0_4 = arith.constant 0 : index
    %5 = vector.load %arg9[%c0_3, %c0_4] : memref<8x128xf32, #tpu.memory_space<vmem>>, vector<8x128xf32>
    %6 = arith.truncf %5 : vector<8x128xf32> to vector<8x128xbf16>
    %c0_5 = arith.constant 0 : index
    %c0_6 = arith.constant 0 : index
    %c0_7 = arith.constant 0 : index
    %7 = vector.load %arg4[%c0_5, %c0_6, %c0_7] : memref<1x128x128xbf16, #tpu.memory_space<vmem>>, vector<1x128x128xbf16>
    %8 = vector.shape_cast %7 : vector<1x128x128xbf16> to vector<128x128xbf16>
    %cst = arith.constant dense<0.000000e+00> : vector<8x128xf32>
    %9 = tpu.matmul %6, %8, %cst {dimension_numbers = #tpu.dot_dimension_numbers<[1], [0], [0], [1], [0, 0, 1, 1], [], []>} : vector<8x128xbf16>, vector<128x128xbf16>, vector<8x128xf32> -> vector<8x128xf32>
    %cst_8 = arith.constant dense<0.000000e+00> : vector<128xf32>
    %10 = vector.multi_reduction <add>, %9, %cst_8 [0] : vector<8x128xf32> to vector<128xf32>
    %11 = vector.shape_cast %10 : vector<128xf32> to vector<1x128xf32>
    %cst_9 = arith.constant 8.000000e+00 : f32
    %12 = vector.broadcast %cst_9 : f32 to vector<1x128xf32>
    %13 = arith.divf %11, %12 : vector<1x128xf32>
    %14 = vector.broadcast %13 : vector<1x128xf32> to vector<8x128xf32>
    %15 = arith.subf %9, %14 : vector<8x128xf32>
    %16 = arith.mulf %15, %15 : vector<8x128xf32>
    %cst_10 = arith.constant dense<0.000000e+00> : vector<128xf32>
    %17 = vector.multi_reduction <add>, %16, %cst_10 [0] : vector<8x128xf32> to vector<128xf32>
    %18 = vector.shape_cast %17 : vector<128xf32> to vector<1x128xf32>
    %cst_11 = arith.constant 8.000000e+00 : f32
    %19 = vector.broadcast %cst_11 : f32 to vector<1x128xf32>
    %20 = arith.divf %18, %19 : vector<1x128xf32>
    %cst_12 = arith.constant 9.99999974E-6 : f32
    %21 = vector.broadcast %cst_12 : f32 to vector<1x128xf32>
    %22 = arith.addf %20, %21 : vector<1x128xf32>
    %23 = math.rsqrt %22 : vector<1x128xf32>
    %24 = arith.mulf %3, %23 : vector<1x128xf32>
    %25 = arith.mulf %13, %24 : vector<1x128xf32>
    %26 = arith.subf %4, %25 : vector<1x128xf32>
    %27 = vector.broadcast %24 : vector<1x128xf32> to vector<8x128xf32>
    %28 = arith.mulf %9, %27 : vector<8x128xf32>
    %29 = vector.broadcast %26 : vector<1x128xf32> to vector<8x128xf32>
    %30 = arith.addf %28, %29 : vector<8x128xf32>
    %cst_13 = arith.constant 0.000000e+00 : f32
    %31 = vector.broadcast %cst_13 : f32 to vector<8x128xf32>
    %32 = arith.maximumf %30, %31 : vector<8x128xf32>
    %c0_14 = arith.constant 0 : index
    %c0_15 = arith.constant 0 : index
    %33 = vector.load %arg9[%c0_14, %c0_15] : memref<8x128xf32, #tpu.memory_space<vmem>>, vector<8x128xf32>
    tpu.vector_store %arg9[%c0_14, %c0_15], %32 {strides = array<i32>} : memref<8x128xf32, #tpu.memory_space<vmem>>, vector<8x128xf32>,
    %c1_i32 = arith.constant 1 : i32
    %34 = arith.cmpi eq, %arg0, %c1_i32 : i32
    %35 = arith.extui %34 : i1 to i32
    %c0_i32_16 = arith.constant 0 : i32
    %36 = arith.cmpi ne, %35, %c0_i32_16 : i32
    scf.if %36 {
      %c0_17 = arith.constant 0 : index
      %c0_18 = arith.constant 0 : index
      %37 = vector.load %arg9[%c0_17, %c0_18] : memref<8x128xf32, #tpu.memory_space<vmem>>, vector<8x128xf32>
      %38 = arith.truncf %37 : vector<8x128xf32> to vector<8x128xbf16>
      %c0_19 = arith.constant 0 : index
      %c0_20 = arith.constant 0 : index
      %39 = vector.load %arg6[%c0_19, %c0_20] : memref<128x128xbf16, #tpu.memory_space<vmem>>, vector<128x128xbf16>
      %cst_21 = arith.constant dense<0.000000e+00> : vector<8x128xf32>
      %40 = tpu.matmul %38, %39, %cst_21 {dimension_numbers = #tpu.dot_dimension_numbers<[1], [0], [0], [1], [0, 0, 1, 1], [], []>} : vector<8x128xbf16>, vector<128x128xbf16>, vector<8x128xf32> -> vector<8x128xf32>
      %c0_22 = arith.constant 0 : index
      %c0_23 = arith.constant 0 : index
      %41 = vector.load %arg7[%c0_22, %c0_23] : memref<1x128xf32, #tpu.memory_space<vmem>>, vector<1x128xf32>
      %42 = vector.broadcast %41 : vector<1x128xf32> to vector<8x128xf32>
      %43 = arith.addf %40, %42 : vector<8x128xf32>
      %c0_24 = arith.constant 0 : index
      %c0_25 = arith.constant 0 : index
      %44 = vector.load %arg8[%c0_24, %c0_25] : memref<8x128xf32, #tpu.memory_space<vmem>>, vector<8x128xf32>
      tpu.vector_store %arg8[%c0_24, %c0_25], %43 {strides = array<i32>} : memref<8x128xf32, #tpu.memory_space<vmem>>, vector<8x128xf32>,
    } else {
    }
    return
  }
  func.func @transform_0(%arg0: i32) -> (i32, i32) {
    %c0_i32 = arith.constant 0 : i32
    %c0_i32_0 = arith.constant 0 : i32
    %c0_i32_1 = arith.constant 0 : i32
    return %c0_i32, %c0_i32_0 : i32, i32
  }
  func.func @transform_1(%arg0: i32) -> (i32, i32) {
    %c0_i32 = arith.constant 0 : i32
    %c0_i32_0 = arith.constant 0 : i32
    %c0_i32_1 = arith.constant 0 : i32
    return %c0_i32, %c0_i32_0 : i32, i32
  }
  func.func @transform_2(%arg0: i32) -> (i32, i32) {
    %c0_i32 = arith.constant 0 : i32
    %c0_i32_0 = arith.constant 0 : i32
    %c0_i32_1 = arith.constant 0 : i32
    return %c0_i32, %c0_i32_0 : i32, i32
  }
  func.func @transform_3(%arg0: i32) -> (i32, i32, i32) {
    %c0_i32 = arith.constant 0 : i32
    %c0_i32_0 = arith.constant 0 : i32
    %c0_i32_1 = arith.constant 0 : i32
    return %arg0, %c0_i32, %c0_i32_0 : i32, i32, i32
  }
  func.func @transform_4(%arg0: i32) -> (i32, i32) {
    %c0_i32 = arith.constant 0 : i32
    %c0_i32_0 = arith.constant 0 : i32
    %c0_i32_1 = arith.constant 0 : i32
    return %c0_i32, %c0_i32_0 : i32, i32
  }
  func.func @transform_5(%arg0: i32) -> (i32, i32) {
    %c0_i32 = arith.constant 0 : i32
    %c0_i32_0 = arith.constant 0 : i32
    %c0_i32_1 = arith.constant 0 : i32
    return %c0_i32, %c0_i32_0 : i32, i32
  }
  func.func @transform_6(%arg0: i32) -> (i32, i32) {
    %c0_i32 = arith.constant 0 : i32
    %c0_i32_0 = arith.constant 0 : i32
    %c0_i32_1 = arith.constant 0 : i32
    return %c0_i32, %c0_i32_0 : i32, i32
  }
  func.func @transform_7(%arg0: i32) -> (i32, i32) {
    %c0_i32 = arith.constant 0 : i32
    %c0_i32_0 = arith.constant 0 : i32
    %c0_i32_1 = arith.constant 0 : i32
    return %c0_i32, %c0_i32_0 : i32, i32
  }
}

</mosaic_0001>

<llo_original>
// kernel: mlp_bn_forward.1
$region0: #{mlp_bn_forward.1}
  #allocation0 [shape = 'u32[]', space=smem, size = 0x4, offset = 0x4, fixed_abs, tag = 'smem constant byte address 0x4 - core index']
  #allocation1 [shape = 'u32[144,128]{1,0:T(1,128)}', space=vmem, size = 0x12000, scoped, tag = 'internal scratch']
  #allocation2 [shape = 'f32[8,128]{1,0:T(8,128)}', space=vmem, size = 0x1000, scoped, tag = 'scratch operand']
  %s0 = inlined_call_operand.vmem [shape: f32[8,128], index: 0, kind: input, shape index: {}]
  %s1 = inlined_call_operand.hbm [shape: bf16[128,128], index: 1, kind: input, shape index: {}]
  %s2 = inlined_call_operand.vmem [shape: f32[1,128], index: 2, kind: input, shape index: {}]
  %s3 = inlined_call_operand.hbm [shape: bf16[2,128,128], index: 3, kind: input, shape index: {}]
  %s4 = inlined_call_operand.vmem [shape: f32[2,128], index: 4, kind: input, shape index: {}]
  %s5 = inlined_call_operand.hbm [shape: bf16[128,128], index: 5, kind: input, shape index: {}]
  %s6 = inlined_call_operand.vmem [shape: f32[1,128], index: 6, kind: input, shape index: {}]
  %s7 = inlined_call_operand.hbm [shape: f32[8,128], index: 7, kind: output, shape index: {}]
  %s8 = sld [smem:[#allocation0]]
  $region81: #{mlp_bn_forward.1} parent=0
    _
  %s10 = ssub.s32 1, %s8
  %s11 = scalar_select 0, %s10, %s8
  $region1: #{mlp_bn_forward.1} parent=0
    #allocation3 [shape = 'u8[32768]{0}', space=vmem, size = 0x8000, scoped, tag = 'input window, operand 1, single buffered']
    #allocation4 [shape = 's32[2]{0}', space=sflag, size = 0x8, scoped, tag = 'scoped memory for mlp_bn_forward.1']
    #allocation5 [shape = 's32[2]{0}', space=sflag, size = 0x8, scoped, tag = 'scoped memory for mlp_bn_forward.1']
    #allocation6 [shape = 'u8[65536]{0}', space=vmem, size = 0x10000, scoped, tag = 'input window, operand 3']
    #allocation7 [shape = 's32[2]{0}', space=sflag, size = 0x8, scoped, tag = 'scoped memory for mlp_bn_forward.1']
    #allocation8 [shape = 'u8[32768]{0}', space=vmem, size = 0x8000, scoped, tag = 'input window, operand 5, single buffered']
    #allocation9 [shape = 'u8[4096]{0}', space=vmem, size = 0x1000, scoped, tag = 'output window, operand 0, single buffered']
    %12 = vsyncpa [#allocation4], 0
    %13 = vsyncpa [#allocation7], 0
    %s14 = scalar_lea.sflag [#allocation7], 1
    %15 = vsyncpa %s14, 0
    %16 = vsyncpa [#allocation5], 0
    loop: start=0, step=1, limit=4
    $region2: #{mlp_bn_forward.1} parent=1 // loop_pre_header
      _
    $region3: #{mlp_bn_forward.1} parent=1 // loop_header
      %s18 = sphi 0, %s22
      %p19 = scmp.ge.s32.totalorder %s18, 4
      %s26 = sphi 0, %s26
      %s28 = sphi 0, %s26
      %s29 = sphi 0, %s28
      %s43 = sphi 0, %s29
      %s47 = sphi 0, %s47
      %s49 = sphi 0, %s47
      %s50 = sphi 0, %s49
      %s64 = sphi 0, %s50
      %s68 = sphi 0, %s68
      %s70 = sphi 0, %s68
      %s71 = sphi 0, %s70
      %s85 = sphi 0, %s71
      %s91 = sphi 0, %s93
      %s94 = sphi 0, %s91
      %s95 = sphi 0, %s94
      %s111 = sphi 0, %s95
      %s115 = sphi 0, %s115
      %s117 = sphi 0, %s115
      %s118 = sphi 0, %s117
      %s132 = sphi 0, %s118
      %s136 = sphi 0, %s136
      %s138 = sphi 0, %s136
      %s139 = sphi 0, %s138
      %s153 = sphi 0, %s139
      %s157 = sphi 0, %s157
      %s159 = sphi 0, %s157
      %s160 = sphi 0, %s159
      %s174 = sphi 0, %s160
      %s178 = sphi 0, %s178
      %s180 = sphi 0, %s178
      %s181 = sphi 0, %s180
      %s195 = sphi 0, %s181
    $region4: #{mlp_bn_forward.1} parent=1 // loop_header_branch
      %21 = sbr.rel (%p19) target = $region8
    $region5: #{mlp_bn_forward.1} parent=1 // loop_body
      %s23 = ssub.s32 %s18, 1
      %s24 = ssub.s32 %s18, 2
      %s25 = sadd.s32 %s18, 1
      %s27 = sadd.s32 %s26, 1
      %p30 = scmp.eq.s32.totalorder %s18, 1
      %p31 = scmp.ne.s32.totalorder %s26, %s28
      %p32 = scmp.eq.s32.totalorder %s18, 0
      %p33 = por %p31, %p32
      %p34 = scmp.ne.s32.totalorder %s26, %s28
      %p35 = scmp.eq.s32.totalorder %s23, 1
      %p36 = por %p34, %p35
      %p37 = scmp.ne.s32.totalorder %s28, %s29
      %p38 = scmp.eq.s32.totalorder %s23, 0
      %p39 = por %p37, %p38
      %p40 = scmp.ne.s32.totalorder %s28, %s29
      %p41 = scmp.eq.s32.totalorder %s24, 1
      %p42 = por %p40, %p41
      %p44 = scmp.ne.s32.totalorder %s29, %s43
      %p45 = scmp.eq.s32.totalorder %s24, 0
      %p46 = por %p44, %p45
      %s48 = sadd.s32 %s47, 1
      %p51 = scmp.eq.s32.totalorder %s18, 1
      %p52 = scmp.ne.s32.totalorder %s47, %s49
      %p53 = scmp.eq.s32.totalorder %s18, 0
      %p54 = por %p52, %p53
      %p55 = scmp.ne.s32.totalorder %s47, %s49
      %p56 = scmp.eq.s32.totalorder %s23, 1
      %p57 = por %p55, %p56
      %p58 = scmp.ne.s32.totalorder %s49, %s50
      %p59 = scmp.eq.s32.totalorder %s23, 0
      %p60 = por %p58, %p59
      %p61 = scmp.ne.s32.totalorder %s49, %s50
      %p62 = scmp.eq.s32.totalorder %s24, 1
      %p63 = por %p61, %p62
      %p65 = scmp.ne.s32.totalorder %s50, %s64
      %p66 = scmp.eq.s32.totalorder %s24, 0
      %p67 = por %p65, %p66
      %s69 = sadd.s32 %s68, 1
      %p72 = scmp.eq.s32.totalorder %s18, 1
      %p73 = scmp.ne.s32.totalorder %s68, %s70
      %p74 = scmp.eq.s32.totalorder %s18, 0
      %p75 = por %p73, %p74
      %p76 = scmp.ne.s32.totalorder %s68, %s70
      %p77 = scmp.eq.s32.totalorder %s23, 1
      %p78 = por %p76, %p77
      %p79 = scmp.ne.s32.totalorder %s70, %s71
      %p80 = scmp.eq.s32.totalorder %s23, 0
      %p81 = por %p79, %p80
      %p82 = scmp.ne.s32.totalorder %s70, %s71
      %p83 = scmp.eq.s32.totalorder %s24, 1
      %p84 = por %p82, %p83
      %p86 = scmp.ne.s32.totalorder %s71, %s85
      %p87 = scmp.eq.s32.totalorder %s24, 0
      %p88 = por %p86, %p87
      %s89 = ssub.s32 %s18, %s25
      %p90 = scmp.eq.s32.totalorder %s89, 0
      %s92 = sadd.s32 %s91, 1
      %s93 = scalar_select %p90, %s91, %s92
      %p96 = pneg %p90
      %p97 = scmp.eq.s32.totalorder %s18, 1
      %p98 = por %p96, %p97
      %p99 = scmp.ne.s32.totalorder %s91, %s94
      %p100 = scmp.eq.s32.totalorder %s18, 0
      %p101 = por %p99, %p100
      %p102 = scmp.ne.s32.totalorder %s91, %s94
      %p103 = scmp.eq.s32.totalorder %s23, 1
      %p104 = por %p102, %p103
      %p105 = scmp.ne.s32.totalorder %s94, %s95
      %p106 = scmp.eq.s32.totalorder %s23, 0
      %p107 = por %p105, %p106
      %p108 = scmp.ne.s32.totalorder %s94, %s95
      %p109 = scmp.eq.s32.totalorder %s24, 1
      %p110 = por %p108, %p109
      %p112 = scmp.ne.s32.totalorder %s95, %s111
      %p113 = scmp.eq.s32.totalorder %s24, 0
      %p114 = por %p112, %p113
      %s116 = sadd.s32 %s115, 1
      %p119 = scmp.eq.s32.totalorder %s18, 1
      %p120 = scmp.ne.s32.totalorder %s115, %s117
      %p121 = scmp.eq.s32.totalorder %s18, 0
      %p122 = por %p120, %p121
      %p123 = scmp.ne.s32.totalorder %s115, %s117
      %p124 = scmp.eq.s32.totalorder %s23, 1
      %p125 = por %p123, %p124
      %p126 = scmp.ne.s32.totalorder %s117, %s118
      %p127 = scmp.eq.s32.totalorder %s23, 0
      %p128 = por %p126, %p127
      %p129 = scmp.ne.s32.totalorder %s117, %s118
      %p130 = scmp.eq.s32.totalorder %s24, 1
      %p131 = por %p129, %p130
      %p133 = scmp.ne.s32.totalorder %s118, %s132
      %p134 = scmp.eq.s32.totalorder %s24, 0
      %p135 = por %p133, %p134
      %s137 = sadd.s32 %s136, 1
      %p140 = scmp.eq.s32.totalorder %s18, 1
      %p141 = scmp.ne.s32.totalorder %s136, %s138
      %p142 = scmp.eq.s32.totalorder %s18, 0
      %p143 = por %p141, %p142
      %p144 = scmp.ne.s32.totalorder %s136, %s138
      %p145 = scmp.eq.s32.totalorder %s23, 1
      %p146 = por %p144, %p145
      %p147 = scmp.ne.s32.totalorder %s138, %s139
      %p148 = scmp.eq.s32.totalorder %s23, 0
      %p149 = por %p147, %p148
      %p150 = scmp.ne.s32.totalorder %s138, %s139
      %p151 = scmp.eq.s32.totalorder %s24, 1
      %p152 = por %p150, %p151
      %p154 = scmp.ne.s32.totalorder %s139, %s153
      %p155 = scmp.eq.s32.totalorder %s24, 0
      %p156 = por %p154, %p155
      %s158 = sadd.s32 %s157, 1
      %p161 = scmp.eq.s32.totalorder %s18, 1
      %p162 = scmp.ne.s32.totalorder %s157, %s159
      %p163 = scmp.eq.s32.totalorder %s18, 0
      %p164 = por %p162, %p163
      %p165 = scmp.ne.s32.totalorder %s157, %s159
      %p166 = scmp.eq.s32.totalorder %s23, 1
      %p167 = por %p165, %p166
      %p168 = scmp.ne.s32.totalorder %s159, %s160
      %p169 = scmp.eq.s32.totalorder %s23, 0
      %p170 = por %p168, %p169
      %p171 = scmp.ne.s32.totalorder %s159, %s160
      %p172 = scmp.eq.s32.totalorder %s24, 1
      %p173 = por %p171, %p172
      %p175 = scmp.ne.s32.totalorder %s160, %s174
      %p176 = scmp.eq.s32.totalorder %s24, 0
      %p177 = por %p175, %p176
      %s179 = sadd.s32 %s178, 1
      %p182 = scmp.eq.s32.totalorder %s18, 1
      %p183 = scmp.ne.s32.totalorder %s178, %s180
      %p184 = scmp.eq.s32.totalorder %s18, 0
      %p185 = por %p183, %p184
      %p186 = scmp.ne.s32.totalorder %s178, %s180
      %p187 = scmp.eq.s32.totalorder %s23, 1
      %p188 = por %p186, %p187
      %p189 = scmp.ne.s32.totalorder %s180, %s181
      %p190 = scmp.eq.s32.totalorder %s23, 0
      %p191 = por %p189, %p190
      %p192 = scmp.ne.s32.totalorder %s180, %s181
      %p193 = scmp.eq.s32.totalorder %s24, 1
      %p194 = por %p192, %p193
      %p196 = scmp.ne.s32.totalorder %s181, %s195
      %p197 = scmp.eq.s32.totalorder %s24, 0
      %p198 = por %p196, %p197
      %p199 = scmp.le.s32.totalorder 1, %s18
      %p200 = scmp.lt.s32.totalorder %s18, 3
      %p201 = pnand %p199, %p200
      %p202 = pneg %p201
      // Predicated region
      $region9: #{mlp_bn_forward.1} parent=5 // pred_check
        _
      $region10: #{mlp_bn_forward.1} parent=5 // pred_check_branch
        %204 = sbr.rel (%p201) target = $region12
      $region11: #{mlp_bn_forward.1} parent=5 // pred_region
        %s205 = ssub.s32 %s18, 1
        // Predicated region
        $region13: #{mlp_bn_forward.1} parent=11 // pred_check
          %p206 = pneg %p39
        $region14: #{mlp_bn_forward.1} parent=11 // pred_check_branch
          %208 = sbr.rel (%p206) target = $region16
        $region15: #{mlp_bn_forward.1} parent=11 // pred_region
          _
        $region16: #{mlp_bn_forward.1} parent=11 // pred_fallthru
          _
        // Predicated region
        $region17: #{mlp_bn_forward.1} parent=11 // pred_check
          %p209 = pneg %p60
        $region18: #{mlp_bn_forward.1} parent=11 // pred_check_branch
          %211 = sbr.rel (%p209) target = $region20
        $region19: #{mlp_bn_forward.1} parent=11 // pred_region
          %s213 = ssub.s32 1024, 1024
          %214 = vsyncadd [#allocation4], %s213
          %s215 = sshll.u32 [#allocation3], 4
          %s216 = int_to_ptr.vmem [resolvable:$true] %s215
          %221 = dma.hbm_to_vmem [thread:$0]  %s1, 1024, %s216, [#allocation4], 64, 64, 4
        $region20: #{mlp_bn_forward.1} parent=11 // pred_fallthru
          _
        // Predicated region
        $region21: #{mlp_bn_forward.1} parent=11 // pred_check
          %p222 = pneg %p81
        $region22: #{mlp_bn_forward.1} parent=11 // pred_check_branch
          %224 = sbr.rel (%p222) target = $region24
        $region23: #{mlp_bn_forward.1} parent=11 // pred_region
          _
        $region24: #{mlp_bn_forward.1} parent=11 // pred_fallthru
          _
        // Predicated region
        $region25: #{mlp_bn_forward.1} parent=11 // pred_check
          %p225 = pneg %p128
        $region26: #{mlp_bn_forward.1} parent=11 // pred_check_branch
          %227 = sbr.rel (%p225) target = $region28
        $region27: #{mlp_bn_forward.1} parent=11 // pred_region
          _
        $region28: #{mlp_bn_forward.1} parent=11 // pred_fallthru
          _
        // Predicated region
        $region29: #{mlp_bn_forward.1} parent=11 // pred_check
          %p228 = pneg %p149
        $region30: #{mlp_bn_forward.1} parent=11 // pred_check_branch
          %230 = sbr.rel (%p228) target = $region32
        $region31: #{mlp_bn_forward.1} parent=11 // pred_region
          %s232 = ssub.s32 1024, 1024
          %233 = vsyncadd [#allocation7], %s232
          %s234 = sshll.u32 [#allocation8], 4
          %s235 = int_to_ptr.vmem [resolvable:$true] %s234
          %240 = dma.hbm_to_vmem [thread:$0]  %s5, 1024, %s235, [#allocation7], 64, 64, 4
        $region32: #{mlp_bn_forward.1} parent=11 // pred_fallthru
          _
        // Predicated region
        $region33: #{mlp_bn_forward.1} parent=11 // pred_check
          %p241 = pneg %p170
        $region34: #{mlp_bn_forward.1} parent=11 // pred_check_branch
          %243 = sbr.rel (%p241) target = $region36
        $region35: #{mlp_bn_forward.1} parent=11 // pred_region
          _
        $region36: #{mlp_bn_forward.1} parent=11 // pred_fallthru
          _
      $region12: #{mlp_bn_forward.1} parent=5 // pred_fallthru
        _
      %p244 = scmp.lt.s32.totalorder %s18, 2
      // Predicated region
      $region37: #{mlp_bn_forward.1} parent=5 // pred_check
        %p245 = pneg %p244
      $region38: #{mlp_bn_forward.1} parent=5 // pred_check_branch
        %247 = sbr.rel (%p245) target = $region40
      $region39: #{mlp_bn_forward.1} parent=5 // pred_region
        // Predicated region
        $region41: #{mlp_bn_forward.1} parent=39 // pred_check
          %p248 = pneg %p101
        $region42: #{mlp_bn_forward.1} parent=39 // pred_check_branch
          %250 = sbr.rel (%p248) target = $region44
        $region43: #{mlp_bn_forward.1} parent=39 // pred_region
          %s251 = sand.u32 %s18, 1
          %s252 = scalar_lea.sflag [#allocation7], %s251
          %s253 = sand.u32 %s91, 1
          %s254 = smul.addr %s253, 64
          %s255 = scalar_lea.vmem [#allocation6], %s254
          %s257 = ssub.s32 1024, 1024
          %258 = vsyncadd %s252, %s257
          %s259 = smul.addr %s18, 16
          %s260 = smul.addr %s259, 64
          %s261 = scalar_lea.hbm %s3, %s260
          %s262 = sshll.u32 %s255, 4
          %s263 = int_to_ptr.vmem [resolvable:$true] %s262
          %268 = dma.hbm_to_vmem [thread:$0]  %s261, 1024, %s263, %s252, 64, 64, 4
        $region44: #{mlp_bn_forward.1} parent=39 // pred_fallthru
          _
      $region40: #{mlp_bn_forward.1} parent=5 // pred_fallthru
        _
      %p269 = scmp.le.s32.totalorder 1, %s18
      %p270 = scmp.lt.s32.totalorder %s18, 3
      %p271 = pnand %p269, %p270
      %p272 = pneg %p271
      // Predicated region
      $region45: #{mlp_bn_forward.1} parent=5 // pred_check
        _
      $region46: #{mlp_bn_forward.1} parent=5 // pred_check_branch
        %274 = sbr.rel (%p271) target = $region48
      $region47: #{mlp_bn_forward.1} parent=5 // pred_region
        %s275 = ssub.s32 %s18, 1
        // Predicated region
        $region49: #{mlp_bn_forward.1} parent=47 // pred_check
          %p276 = pneg %p60
        $region50: #{mlp_bn_forward.1} parent=47 // pred_check_branch
          %278 = sbr.rel (%p276) target = $region52
        $region51: #{mlp_bn_forward.1} parent=47 // pred_region
          %279 = dma.done [#allocation4], 1024
        $region52: #{mlp_bn_forward.1} parent=47 // pred_fallthru
          _
        %s280 = sand.u32 %s23, 1
        %s281 = scalar_lea.sflag [#allocation7], %s280
        %s282 = sand.u32 %s94, 1
        %s283 = smul.addr %s282, 64
        %s284 = scalar_lea.vmem [#allocation6], %s283
        // Predicated region
        $region53: #{mlp_bn_forward.1} parent=47 // pred_check
          %p285 = pneg %p107
        $region54: #{mlp_bn_forward.1} parent=47 // pred_check_branch
          %287 = sbr.rel (%p285) target = $region56
        $region55: #{mlp_bn_forward.1} parent=47 // pred_region
          %288 = dma.done %s281, 1024
        $region56: #{mlp_bn_forward.1} parent=47 // pred_fallthru
          _
        // Predicated region
        $region57: #{mlp_bn_forward.1} parent=47 // pred_check
          %p289 = pneg %p149
        $region58: #{mlp_bn_forward.1} parent=47 // pred_check_branch
          %291 = sbr.rel (%p289) target = $region60
        $region59: #{mlp_bn_forward.1} parent=47 // pred_region
          %292 = dma.done [#allocation7], 1024
        $region60: #{mlp_bn_forward.1} parent=47 // pred_fallthru
          _
        %p293 = pneg %p39
        %p294 = pneg %p36
        %p295 = pneg %p60
        %p296 = pneg %p57
        %p297 = pneg %p81
        %p298 = pneg %p78
        %s299 = sand.u32 %s23, 1
        %s300 = scalar_lea.sflag [#allocation7], %s299
        %s301 = sand.u32 %s94, 1
        %s302 = smul.addr %s301, 64
        %s303 = scalar_lea.vmem [#allocation6], %s302
        %p304 = pneg %p107
        %p305 = pneg %p104
        %p306 = pneg %p128
        %p307 = pneg %p125
        %p308 = pneg %p149
        %p309 = pneg %p146
        %p310 = pneg %p170
        %p311 = pneg %p167
        %p312 = pneg %p191
        %p313 = pneg %p188
        %p315 = scmp.eq.s32.totalorder %s23, 0
        // Predicated region
        $region61: #{mlp_bn_forward.1} parent=47 // pred_check
          %p316 = pneg %p315
        $region62: #{mlp_bn_forward.1} parent=47 // pred_check_branch
          %318 = sbr.rel (%p316) target = $region64
        $region63: #{mlp_bn_forward.1} parent=47 // pred_region
          %v319 = vld [vmem:[%s0] sm:$0xff]
          %v320 = vpack.c.bf16 %v319, %v319
          %v321 = vld [vmem:[#allocation3] sm:$0xf]
          %v322 = vld [vmem:[#allocation3 + $0x4] sm:$0xf]
          %v323 = vld [vmem:[#allocation3 + $0x8] sm:$0xf]
          %v324 = vld [vmem:[#allocation3 + $0xc] sm:$0xf]
          %v325 = vld [vmem:[#allocation3 + $0x10] sm:$0xf]
          %v326 = vld [vmem:[#allocation3 + $0x14] sm:$0xf]
          %v327 = vld [vmem:[#allocation3 + $0x18] sm:$0xf]
          %v328 = vld [vmem:[#allocation3 + $0x1c] sm:$0xf]
          %v329 = vld [vmem:[#allocation3 + $0x20] sm:$0xf]
          %v330 = vld [vmem:[#allocation3 + $0x24] sm:$0xf]
          %v331 = vld [vmem:[#allocation3 + $0x28] sm:$0xf]
          %v332 = vld [vmem:[#allocation3 + $0x2c] sm:$0xf]
          %v333 = vld [vmem:[#allocation3 + $0x30] sm:$0xf]
          %v334 = vld [vmem:[#allocation3 + $0x34] sm:$0xf]
          %v335 = vld [vmem:[#allocation3 + $0x38] sm:$0xf]
          %v336 = vld [vmem:[#allocation3 + $0x3c] sm:$0xf]
          %v337 = vld [vmem:[%s2] sm:$0x1]
          %v339 = vlaneseq
          %v340 = vshrl.u32 %v339, 7
          %v341 = vsub.s32 0, %v340
          %v342 = vrot.slane %v337, %v341
          %v360 = vunpack.c.l.b16 %v321
          %v361 = vunpack.c.l.b16 %v322
          %v362 = vunpack.c.l.b16 %v323
          %v363 = vunpack.c.l.b16 %v324
          %v364 = vunpack.c.l.b16 %v325
          %v365 = vunpack.c.l.b16 %v326
          %v366 = vunpack.c.l.b16 %v327
          %v367 = vunpack.c.l.b16 %v328
          %v368 = vunpack.c.l.b16 %v329
          %v369 = vunpack.c.l.b16 %v330
          %v370 = vunpack.c.l.b16 %v331
          %v371 = vunpack.c.l.b16 %v332
          %v372 = vunpack.c.l.b16 %v333
          %v373 = vunpack.c.l.b16 %v334
          %v374 = vunpack.c.l.b16 %v335
          %v375 = vunpack.c.l.b16 %v336
          %v376 = vpack.c.b16 %v361, %v360
          %v377 = vpack.c.b16 %v363, %v362
          %v378 = vpack.c.b16 %v365, %v364
          %v379 = vpack.c.b16 %v367, %v366
          %v380 = vpack.c.b16 %v369, %v368
          %v381 = vpack.c.b16 %v371, %v370
          %v382 = vpack.c.b16 %v373, %v372
          %v383 = vpack.c.b16 %v375, %v374
          %392 = vmatprep.subr.bf16.mxu0 0
          %393 = vmatpush1.bf16.msra.mxu0 %v376
          %394 = vmatprep.subr.bf16.mxu0 0
          %395 = vmatpush1.bf16.msra.mxu0 %v377
          %396 = vmatprep.subr.bf16.mxu0 0
          %397 = vmatpush1.bf16.msra.mxu0 %v378
          %398 = vmatprep.subr.bf16.mxu0 0
          %399 = vmatpush1.bf16.msra.mxu0 %v379
          %400 = vmatprep.subr.bf16.mxu0 0
          %401 = vmatpush1.bf16.msra.mxu0 %v380
          %402 = vmatprep.subr.bf16.mxu0 0
          %403 = vmatpush1.bf16.msra.mxu0 %v381
          %404 = vmatprep.subr.bf16.mxu0 0
          %405 = vmatpush1.bf16.msra.mxu0 %v382
          %406 = vmatprep.subr.bf16.mxu0 0
          %407 = vmatpush1.bf16.msra.mxu0 %v383
          %408 = vmatprep.subr.bf16.mxu0 0
          %409 = vmatpush1.bf16.msra.mxu0 0
          %410 = vmatprep.subr.bf16.mxu0 0
          %411 = vmatpush1.bf16.msra.mxu0 0
          %412 = vmatprep.subr.bf16.mxu0 0
          %413 = vmatpush1.bf16.msra.mxu0 0
          %414 = vmatprep.subr.bf16.mxu0 0
          %415 = vmatpush1.bf16.msra.mxu0 0
          %416 = vmatprep.subr.bf16.mxu0 0
          %417 = vmatpush1.bf16.msra.mxu0 0
          %418 = vmatprep.subr.bf16.mxu0 0
          %419 = vmatpush1.bf16.msra.mxu0 0
          %420 = vmatprep.subr.bf16.mxu0 0
          %421 = vmatpush1.bf16.msra.mxu0 0
          %422 = vmatprep.subr.bf16.mxu0 0
          %423 = vmatpush1.bf16.msra.mxu0 0
          %424 = vmatprep.mubr.bf16.mxu0 0
          %425 = vmatmul.mubr.bf16.gmra.mrb[0].mxu0 %v320
          %v426 = vpop.f32.mrb[0].mxu0
          %v427 = vadd.f32 %v342, %v426
          %v428 = vpop.f32.mrb[0].mxu0
          %v429 = vpop.f32.mrb[0].mxu0
          %v430 = vpop.f32.mrb[0].mxu0
          %431 = vdwg.mxu0
          %v432 = vmax.f32 %v427, 0.0
          %433 = vst [vmem:[#allocation2] sm:$0xff] %v432
        $region64: #{mlp_bn_forward.1} parent=47 // pred_fallthru
          _
        %v434 = vld [vmem:[%s4] sm:$0x1]
        %v435 = vld [vmem:[%s4 + $0x1] sm:$0x1]
        %v436 = vld [vmem:[#allocation2] sm:$0xff]
        %v437 = vpack.c.bf16 %v436, %v436
        %v438 = vld [vmem:[%s284] sm:$0xf]
        %v439 = vld [vmem:[%s284 + $0x4] sm:$0xf]
        %v440 = vld [vmem:[%s284 + $0x8] sm:$0xf]
        %v441 = vld [vmem:[%s284 + $0xc] sm:$0xf]
        %v442 = vld [vmem:[%s284 + $0x10] sm:$0xf]
        %v443 = vld [vmem:[%s284 + $0x14] sm:$0xf]
        %v444 = vld [vmem:[%s284 + $0x18] sm:$0xf]
        %v445 = vld [vmem:[%s284 + $0x1c] sm:$0xf]
        %v446 = vld [vmem:[%s284 + $0x20] sm:$0xf]
        %v447 = vld [vmem:[%s284 + $0x24] sm:$0xf]
        %v448 = vld [vmem:[%s284 + $0x28] sm:$0xf]
        %v449 = vld [vmem:[%s284 + $0x2c] sm:$0xf]
        %v450 = vld [vmem:[%s284 + $0x30] sm:$0xf]
        %v451 = vld [vmem:[%s284 + $0x34] sm:$0xf]
        %v452 = vld [vmem:[%s284 + $0x38] sm:$0xf]
        %v453 = vld [vmem:[%s284 + $0x3c] sm:$0xf]
        %v470 = vunpack.c.l.b16 %v438
        %v471 = vunpack.c.l.b16 %v439
        %v472 = vunpack.c.l.b16 %v440
        %v473 = vunpack.c.l.b16 %v441
        %v474 = vunpack.c.l.b16 %v442
        %v475 = vunpack.c.l.b16 %v443
        %v476 = vunpack.c.l.b16 %v444
        %v477 = vunpack.c.l.b16 %v445
        %v478 = vunpack.c.l.b16 %v446
        %v479 = vunpack.c.l.b16 %v447
        %v480 = vunpack.c.l.b16 %v448
        %v481 = vunpack.c.l.b16 %v449
        %v482 = vunpack.c.l.b16 %v450
        %v483 = vunpack.c.l.b16 %v451
        %v484 = vunpack.c.l.b16 %v452
        %v485 = vunpack.c.l.b16 %v453
        %v486 = vpack.c.b16 %v471, %v470
        %v487 = vpack.c.b16 %v473, %v472
        %v488 = vpack.c.b16 %v475, %v474
        %v489 = vpack.c.b16 %v477, %v476
        %v490 = vpack.c.b16 %v479, %v478
        %v491 = vpack.c.b16 %v481, %v480
        %v492 = vpack.c.b16 %v483, %v482
        %v493 = vpack.c.b16 %v485, %v484
        %502 = vmatprep.subr.bf16.mxu0 0
        %503 = vmatpush1.bf16.msra.mxu0 %v486
        %504 = vmatprep.subr.bf16.mxu0 0
        %505 = vmatpush1.bf16.msra.mxu0 %v487
        %506 = vmatprep.subr.bf16.mxu0 0
        %507 = vmatpush1.bf16.msra.mxu0 %v488
        %508 = vmatprep.subr.bf16.mxu0 0
        %509 = vmatpush1.bf16.msra.mxu0 %v489
        %510 = vmatprep.subr.bf16.mxu0 0
        %511 = vmatpush1.bf16.msra.mxu0 %v490
        %512 = vmatprep.subr.bf16.mxu0 0
        %513 = vmatpush1.bf16.msra.mxu0 %v491
        %514 = vmatprep.subr.bf16.mxu0 0
        %515 = vmatpush1.bf16.msra.mxu0 %v492
        %516 = vmatprep.subr.bf16.mxu0 0
        %517 = vmatpush1.bf16.msra.mxu0 %v493
        %518 = vmatprep.subr.bf16.mxu0 0
        %519 = vmatpush1.bf16.msra.mxu0 0
        %520 = vmatprep.subr.bf16.mxu0 0
        %521 = vmatpush1.bf16.msra.mxu0 0
        %522 = vmatprep.subr.bf16.mxu0 0
        %523 = vmatpush1.bf16.msra.mxu0 0
        %524 = vmatprep.subr.bf16.mxu0 0
        %525 = vmatpush1.bf16.msra.mxu0 0
        %526 = vmatprep.subr.bf16.mxu0 0
        %527 = vmatpush1.bf16.msra.mxu0 0
        %528 = vmatprep.subr.bf16.mxu0 0
        %529 = vmatpush1.bf16.msra.mxu0 0
        %530 = vmatprep.subr.bf16.mxu0 0
        %531 = vmatpush1.bf16.msra.mxu0 0
        %532 = vmatprep.subr.bf16.mxu0 0
        %533 = vmatpush1.bf16.msra.mxu0 0
        %534 = vmatprep.mubr.bf16.mxu0 0
        %535 = vmatmul.mubr.bf16.gmra.mrb[0].mxu0 %v437
        %v536 = vpop.f32.mrb[0].mxu0
        %v537 = vadd.f32 0.0, %v536
        %v538 = vpop.f32.mrb[0].mxu0
        %v539 = vpop.f32.mrb[0].mxu0
        %v540 = vpop.f32.mrb[0].mxu0
        %541 = vdwg.mxu0
        %v542 = vrot.slane %v537, 4
        %v543 = vadd.f32 %v537, %v542
        %v544 = vrot.slane %v543, 2
        %v545 = vadd.f32 %v543, %v544
        %v546 = vrot.slane %v545, 1
        %v547 = vadd.f32 %v545, %v546
        %v548 = vrcp.pop 8.0
        %v549 = vmul.f32 %v547, %v548
        %v550 = vsub.f32 %v537, %v549
        %v551 = vmul.f32 %v550, %v550
        %v552 = vrot.slane %v551, 4
        %v553 = vadd.f32 %v551, %v552
        %v554 = vrot.slane %v553, 2
        %v555 = vadd.f32 %v553, %v554
        %v556 = vrot.slane %v555, 1
        %v557 = vadd.f32 %v555, %v556
        %v558 = vmul.f32 %v557, %v548
        %v559 = vadd.f32 %v558, 1e-05
        %v560 = vrsqrt.pop %v559
        %v561 = vmul.f32 %v434, %v560
        %v562 = vmul.f32 %v549, %v561
        %v563 = vsub.f32 %v435, %v562
        %v564 = vlaneseq
        %v565 = vshrl.u32 %v564, 7
        %v566 = vsub.s32 0, %v565
        %v567 = vrot.slane %v561, %v566
        %v568 = vmul.f32 %v537, %v567
        %v569 = vlaneseq
        %v570 = vshrl.u32 %v569, 7
        %v571 = vsub.s32 0, %v570
        %v572 = vrot.slane %v563, %v571
        %v573 = vadd.f32 %v568, %v572
        %v574 = vmax.f32 %v573, 0.0
        %575 = vst [vmem:[#allocation2] sm:$0xff] %v574
        %p576 = scmp.eq.s32.totalorder %s23, 1
        // Predicated region
        $region65: #{mlp_bn_forward.1} parent=47 // pred_check
          %p577 = pneg %p576
        $region66: #{mlp_bn_forward.1} parent=47 // pred_check_branch
          %579 = sbr.rel (%p577) target = $region68
        $region67: #{mlp_bn_forward.1} parent=47 // pred_region
          %v580 = vld [vmem:[#allocation2] sm:$0xff]
          %v581 = vpack.c.bf16 %v580, %v580
          %v582 = vld [vmem:[#allocation8] sm:$0xf]
          %v583 = vld [vmem:[#allocation8 + $0x4] sm:$0xf]
          %v584 = vld [vmem:[#allocation8 + $0x8] sm:$0xf]
          %v585 = vld [vmem:[#allocation8 + $0xc] sm:$0xf]
          %v586 = vld [vmem:[#allocation8 + $0x10] sm:$0xf]
          %v587 = vld [vmem:[#allocation8 + $0x14] sm:$0xf]
          %v588 = vld [vmem:[#allocation8 + $0x18] sm:$0xf]
          %v589 = vld [vmem:[#allocation8 + $0x1c] sm:$0xf]
          %v590 = vld [vmem:[#allocation8 + $0x20] sm:$0xf]
          %v591 = vld [vmem:[#allocation8 + $0x24] sm:$0xf]
          %v592 = vld [vmem:[#allocation8 + $0x28] sm:$0xf]
          %v593 = vld [vmem:[#allocation8 + $0x2c] sm:$0xf]
          %v594 = vld [vmem:[#allocation8 + $0x30] sm:$0xf]
          %v595 = vld [vmem:[#allocation8 + $0x34] sm:$0xf]
          %v596 = vld [vmem:[#allocation8 + $0x38] sm:$0xf]
          %v597 = vld [vmem:[#allocation8 + $0x3c] sm:$0xf]
          %v598 = vld [vmem:[%s6] sm:$0x1]
          %v600 = vlaneseq
          %v601 = vshrl.u32 %v600, 7
          %v602 = vsub.s32 0, %v601
          %v603 = vrot.slane %v598, %v602
          %v621 = vunpack.c.l.b16 %v582
          %v622 = vunpack.c.l.b16 %v583
          %v623 = vunpack.c.l.b16 %v584
          %v624 = vunpack.c.l.b16 %v585
          %v625 = vunpack.c.l.b16 %v586
          %v626 = vunpack.c.l.b16 %v587
          %v627 = vunpack.c.l.b16 %v588
          %v628 = vunpack.c.l.b16 %v589
          %v629 = vunpack.c.l.b16 %v590
          %v630 = vunpack.c.l.b16 %v591
          %v631 = vunpack.c.l.b16 %v592
          %v632 = vunpack.c.l.b16 %v593
          %v633 = vunpack.c.l.b16 %v594
          %v634 = vunpack.c.l.b16 %v595
          %v635 = vunpack.c.l.b16 %v596
          %v636 = vunpack.c.l.b16 %v597
          %v637 = vpack.c.b16 %v622, %v621
          %v638 = vpack.c.b16 %v624, %v623
          %v639 = vpack.c.b16 %v626, %v625
          %v640 = vpack.c.b16 %v628, %v627
          %v641 = vpack.c.b16 %v630, %v629
          %v642 = vpack.c.b16 %v632, %v631
          %v643 = vpack.c.b16 %v634, %v633
          %v644 = vpack.c.b16 %v636, %v635
          %653 = vmatprep.subr.bf16.mxu0 0
          %654 = vmatpush1.bf16.msra.mxu0 %v637
          %655 = vmatprep.subr.bf16.mxu0 0
          %656 = vmatpush1.bf16.msra.mxu0 %v638
          %657 = vmatprep.subr.bf16.mxu0 0
          %658 = vmatpush1.bf16.msra.mxu0 %v639
          %659 = vmatprep.subr.bf16.mxu0 0
          %660 = vmatpush1.bf16.msra.mxu0 %v640
          %661 = vmatprep.subr.bf16.mxu0 0
          %662 = vmatpush1.bf16.msra.mxu0 %v641
          %663 = vmatprep.subr.bf16.mxu0 0
          %664 = vmatpush1.bf16.msra.mxu0 %v642
          %665 = vmatprep.subr.bf16.mxu0 0
          %666 = vmatpush1.bf16.msra.mxu0 %v643
          %667 = vmatprep.subr.bf16.mxu0 0
          %668 = vmatpush1.bf16.msra.mxu0 %v644
          %669 = vmatprep.subr.bf16.mxu0 0
          %670 = vmatpush1.bf16.msra.mxu0 0
          %671 = vmatprep.subr.bf16.mxu0 0
          %672 = vmatpush1.bf16.msra.mxu0 0
          %673 = vmatprep.subr.bf16.mxu0 0
          %674 = vmatpush1.bf16.msra.mxu0 0
          %675 = vmatprep.subr.bf16.mxu0 0
          %676 = vmatpush1.bf16.msra.mxu0 0
          %677 = vmatprep.subr.bf16.mxu0 0
          %678 = vmatpush1.bf16.msra.mxu0 0
          %679 = vmatprep.subr.bf16.mxu0 0
          %680 = vmatpush1.bf16.msra.mxu0 0
          %681 = vmatprep.subr.bf16.mxu0 0
          %682 = vmatpush1.bf16.msra.mxu0 0
          %683 = vmatprep.subr.bf16.mxu0 0
          %684 = vmatpush1.bf16.msra.mxu0 0
          %685 = vmatprep.mubr.bf16.mxu0 0
          %686 = vmatmul.mubr.bf16.gmra.mrb[0].mxu0 %v581
          %v687 = vpop.f32.mrb[0].mxu0
          %v688 = vadd.f32 %v603, %v687
          %v689 = vpop.f32.mrb[0].mxu0
          %v690 = vpop.f32.mrb[0].mxu0
          %v691 = vpop.f32.mrb[0].mxu0
          %692 = vdwg.mxu0
          %693 = vst [vmem:[#allocation9] sm:$0xff] %v688
        $region68: #{mlp_bn_forward.1} parent=47 // pred_fallthru
          _
        // Predicated region
        $region69: #{mlp_bn_forward.1} parent=47 // pred_check
          %p694 = pneg %p188
        $region70: #{mlp_bn_forward.1} parent=47 // pred_check_branch
          %696 = sbr.rel (%p694) target = $region72
        $region71: #{mlp_bn_forward.1} parent=47 // pred_region
          %s698 = ssub.s32 128, 128
          %699 = vsyncadd [#allocation5], %s698
          %s701 = sshll.u32 [#allocation9], 4
          %s702 = int_to_ptr.vmem [resolvable:$true] %s701
          %704 = dma.vmem_to_hbm [thread:$0]  %s702, 128, %s7, [#allocation5]
        $region72: #{mlp_bn_forward.1} parent=47 // pred_fallthru
          _
        // Predicated region
        $region73: #{mlp_bn_forward.1} parent=47 // pred_check
          %p705 = pneg %p188
        $region74: #{mlp_bn_forward.1} parent=47 // pred_check_branch
          %707 = sbr.rel (%p705) target = $region76
        $region75: #{mlp_bn_forward.1} parent=47 // pred_region
          %708 = dma.done [#allocation5], 128
        $region76: #{mlp_bn_forward.1} parent=47 // pred_fallthru
          _
      $region48: #{mlp_bn_forward.1} parent=5 // pred_fallthru
        _
      %p709 = scmp.le.s32.totalorder 2, %s18
      // Predicated region
      $region77: #{mlp_bn_forward.1} parent=5 // pred_check
        %p710 = pneg %p709
      $region78: #{mlp_bn_forward.1} parent=5 // pred_check_branch
        %712 = sbr.rel (%p710) target = $region80
      $region79: #{mlp_bn_forward.1} parent=5 // pred_region
        %s713 = ssub.s32 %s18, 2
      $region80: #{mlp_bn_forward.1} parent=5 // pred_fallthru
        _
    $region6: #{mlp_bn_forward.1} parent=1 // loop_footer
      %s22 = sadd.s32 1, %s18
    $region7: #{mlp_bn_forward.1} parent=1 // loop_footer_branch
      %17 = sbr.rel target = $region3
    $region8: #{mlp_bn_forward.1} parent=1 // loop_exit
      _
    %714 = vsyncpa [#allocation4], 1
    %s715 = scalar_lea.sflag [#allocation4], 1
    %716 = vsyncpa %s715, 1
    %717 = vsyncpa [#allocation7], 1
    %s718 = scalar_lea.sflag [#allocation7], 1
    %719 = vsyncpa %s718, 1
    %720 = vsyncpa [#allocation5], 1
    %s721 = scalar_lea.sflag [#allocation5], 1
    %722 = vsyncpa %s721, 1

</llo_original>
